<compile_context>
chip_gen: v6e
topology: v6e:2x2x1
jax: 0.10.0
libtpu: 0.0.40
codegen_flags: <defaults>
</compile_context>

<pallas_src>
import jax
import jax.numpy as jnp
from jax.experimental import pallas as pl
from jax.experimental.pallas import tpu as pltpu

NUM_MODELS = 3
BATCH = 8          # small demo batch (one 8-sublane tile, single grid step)
D_IN = 128         # lane-aligned K
D_OUT = 128        # lane-dense output -> unmasked full-lane stores


def ensemble_kernel(x_ref, w_ref, b_ref, o_ref):
    """Fused ensemble-of-linear-models forward.

    x_ref: [TB, D_IN]          (VMEM) current batch tile
    w_ref: [M, D_IN, D_OUT]    (VMEM) stacked member weights (resident)
    b_ref: [M, D_OUT]          (VMEM) stacked member biases  (resident)
    o_ref: [TB, D_OUT]         (VMEM) mean of member outputs
    """
    num_models = w_ref.shape[0]
    inv_m = jnp.float32(1.0 / num_models)

    # Fold the ensemble mean into the parameters (mathematically exact):
    #   mean_m(x @ W_m + b_m) == x @ mean_m(W_m) + mean_m(b_m)
    # M is tiny, so this is (M-1) VPU adds + 1 mul on parameter-sized tiles;
    # the reduction over models never touches the activation path.
    w_mean = jnp.sum(w_ref[...], axis=0) * inv_m                    # [D_IN, D_OUT]
    b_mean = jnp.sum(b_ref[...], axis=0, keepdims=True) * inv_m     # [1, D_OUT]

    # Single MXU push with f32 accumulation, one broadcast bias add,
    # one lane-dense store.
    acc = jnp.dot(x_ref[...], w_mean, preferred_element_type=jnp.float32)
    o_ref[...] = (acc + b_mean).astype(o_ref.dtype)


def ensemble_forward(x, w_stacked, b_stacked, *, batch_tile=None):
    """x: [B, D_IN]; w_stacked: [M, D_IN, D_OUT]; b_stacked: [M, D_OUT]."""
    batch, d_in = x.shape
    num_models, _, d_out = w_stacked.shape
    tb = batch if batch_tile is None else batch_tile
    grid = (pl.cdiv(batch, tb),)

    return pl.pallas_call(
        ensemble_kernel,
        out_shape=jax.ShapeDtypeStruct((batch, d_out), x.dtype),
        grid_spec=pltpu.PrefetchScalarGridSpec(
            num_scalar_prefetch=0,
            grid=grid,
            in_specs=[
                # Batch tile marches with the grid.
                pl.BlockSpec((tb, d_in), lambda i: (i, 0)),
                # Full parameter stack, same block every step -> stays resident.
                pl.BlockSpec((num_models, d_in, d_out), lambda i: (0, 0, 0)),
                pl.BlockSpec((num_models, d_out), lambda i: (0, 0)),
            ],
            out_specs=pl.BlockSpec((tb, d_out), lambda i: (i, 0)),
        ),
        compiler_params=pltpu.CompilerParams(
            dimension_semantics=("parallel",),
        ),
    )(x, w_stacked, b_stacked)


if __name__ == "__main__":
    key = jax.random.PRNGKey(0)
    kx, kw, kb = jax.random.split(key, 3)

    # Deterministic synthetic ensemble parameters (stand-in for the members'
    # nn.Linear weights, stored pre-transposed as [M, D_IN, D_OUT]).
    x = jax.random.normal(kx, (BATCH, D_IN), dtype=jnp.float32)
    w_stacked = jax.random.normal(kw, (NUM_MODELS, D_IN, D_OUT), dtype=jnp.float32) * 0.1
    b_stacked = jax.random.normal(kb, (NUM_MODELS, D_OUT), dtype=jnp.float32) * 0.1

    out = jax.block_until_ready(ensemble_forward(x, w_stacked, b_stacked))

    # Pure-JAX reference: mean over members of (x @ W_m + b_m).
    ref = jnp.mean(
        jnp.einsum("bi,mio->mbo", x, w_stacked,
                   precision=jax.lax.Precision.HIGHEST)
        + b_stacked[:, None, :],
        axis=0,
    )
    assert jnp.allclose(out, ref, atol=1e-4, rtol=1e-4), "mismatch vs reference"

    print("KERNEL_OK")
</pallas_src>

<mosaic_0001>
module attributes {stable_mosaic.version = 11 : i64} {
  func.func @ensemble_kernel(%arg0: i32, %arg1: memref<8x128xf32, #tpu.memory_space<vmem>>, %arg2: memref<3x128x128xf32, #tpu.memory_space<vmem>>, %arg3: memref<3x128xf32, #tpu.memory_space<vmem>>, %arg4: memref<8x128xf32, #tpu.memory_space<vmem>>) attributes {dimension_semantics = [#tpu.dimension_semantics<parallel>], iteration_bounds = array<i64: 1>, scalar_prefetch = 0 : i64, scratch_operands = 0 : i64, tpu.core_type = #tpu.core_type<tc>, window_params = [{transform_indices = @transform_0, window_bounds = array<i64: 8, 128>}, {pipeline_mode = #tpu.pipeline_mode<synchronous>, transform_indices = @transform_1, window_bounds = array<i64: 3, 128, 128>}, {pipeline_mode = #tpu.pipeline_mode<synchronous>, transform_indices = @transform_2, window_bounds = array<i64: 3, 128>}, {transform_indices = @transform_3, window_bounds = array<i64: 8, 128>}]} {
    %c0 = arith.constant 0 : index
    %c0_0 = arith.constant 0 : index
    %c0_1 = arith.constant 0 : index
    %0 = vector.load %arg2[%c0, %c0_0, %c0_1] : memref<3x128x128xf32, #tpu.memory_space<vmem>>, vector<3x128x128xf32>
    %cst = arith.constant dense<0.000000e+00> : vector<128x128xf32>
    %1 = vector.multi_reduction <add>, %0, %cst [0] : vector<3x128x128xf32> to vector<128x128xf32>
    %cst_2 = arith.constant 0.333333343 : f32
    %2 = vector.broadcast %cst_2 : f32 to vector<128x128xf32>
    %3 = arith.mulf %1, %2 : vector<128x128xf32>
    %c0_3 = arith.constant 0 : index
    %c0_4 = arith.constant 0 : index
    %4 = vector.load %arg3[%c0_3, %c0_4] : memref<3x128xf32, #tpu.memory_space<vmem>>, vector<3x128xf32>
    %cst_5 = arith.constant dense<0.000000e+00> : vector<128xf32>
    %5 = vector.multi_reduction <add>, %4, %cst_5 [0] : vector<3x128xf32> to vector<128xf32>
    %6 = vector.shape_cast %5 : vector<128xf32> to vector<1x128xf32>
    %cst_6 = arith.constant 0.333333343 : f32
    %7 = vector.broadcast %cst_6 : f32 to vector<1x128xf32>
    %8 = arith.mulf %6, %7 : vector<1x128xf32>
    %c0_7 = arith.constant 0 : index
    %c0_8 = arith.constant 0 : index
    %9 = vector.load %arg1[%c0_7, %c0_8] : memref<8x128xf32, #tpu.memory_space<vmem>>, vector<8x128xf32>
    %cst_9 = arith.constant dense<0.000000e+00> : vector<8x128xf32>
    %10 = tpu.matmul %9, %3, %cst_9 {dimension_numbers = #tpu.dot_dimension_numbers<[1], [0], [0], [1], [0, 0, 1, 1], [], []>} : vector<8x128xf32>, vector<128x128xf32>, vector<8x128xf32> -> vector<8x128xf32>
    %11 = vector.broadcast %8 : vector<1x128xf32> to vector<8x128xf32>
    %12 = arith.addf %10, %11 : vector<8x128xf32>
    %c0_10 = arith.constant 0 : index
    %c0_11 = arith.constant 0 : index
    %13 = vector.load %arg4[%c0_10, %c0_11] : memref<8x128xf32, #tpu.memory_space<vmem>>, vector<8x128xf32>
    tpu.vector_store %arg4[%c0_10, %c0_11], %12 {strides = array<i32>} : memref<8x128xf32, #tpu.memory_space<vmem>>, vector<8x128xf32>,
    return
  }
  func.func @transform_0(%arg0: i32) -> (i32, i32) {
    %c0_i32 = arith.constant 0 : i32
    %c0_i32_0 = arith.constant 0 : i32
    return %arg0, %c0_i32 : i32, i32
  }
  func.func @transform_1(%arg0: i32) -> (i32, i32, i32) {
    %c0_i32 = arith.constant 0 : i32
    %c0_i32_0 = arith.constant 0 : i32
    %c0_i32_1 = arith.constant 0 : i32
    %c0_i32_2 = arith.constant 0 : i32
    return %c0_i32, %c0_i32_0, %c0_i32_1 : i32, i32, i32
  }
  func.func @transform_2(%arg0: i32) -> (i32, i32) {
    %c0_i32 = arith.constant 0 : i32
    %c0_i32_0 = arith.constant 0 : i32
    %c0_i32_1 = arith.constant 0 : i32
    return %c0_i32, %c0_i32_0 : i32, i32
  }
  func.func @transform_3(%arg0: i32) -> (i32, i32) {
    %c0_i32 = arith.constant 0 : i32
    %c0_i32_0 = arith.constant 0 : i32
    return %arg0, %c0_i32 : i32, i32
  }
}

</mosaic_0001>

<llo_original>
// kernel: tpu_custom_call.1
$region0: #{tpu_custom_call.1}
  #allocation0 [shape = 'u32[]', space=smem, size = 0x4, offset = 0x4, fixed_abs, tag = 'smem constant byte address 0x4 - core index']
  #allocation1 [shape = 'u32[144,128]{1,0:T(1,128)}', space=vmem, size = 0x12000, scoped, tag = 'internal scratch']
  %s0 = inlined_call_operand.hbm [shape: f32[8,128], index: 0, kind: input, shape index: {}]
  %s1 = inlined_call_operand.hbm [shape: f32[3,128,128], index: 1, kind: input, shape index: {}]
  %s2 = inlined_call_operand.hbm [shape: f32[3,128], index: 2, kind: input, shape index: {}]
  %s3 = inlined_call_operand.hbm [shape: f32[8,128], index: 3, kind: output, shape index: {}]
  %s4 = sld [smem:[#allocation0]]
  $region34: #{tpu_custom_call.1} parent=0
    _
  %s6 = ssub.s32 1, %s4
  %s7 = scalar_select 0, %s6, %s4
  $region1: #{tpu_custom_call.1} parent=0
    #allocation2 [shape = 'u8[4096]{0}', space=vmem, size = 0x1000, scoped, tag = 'input window, operand 0, single buffered']
    #allocation3 [shape = 's32[1]{0}', space=sflag, size = 0x4, scoped, tag = 'scoped memory for tpu_custom_call.1']
    #allocation4 [shape = 's32[1]{0}', space=sflag, size = 0x4, scoped, tag = 'scoped memory for tpu_custom_call.1']
    #allocation5 [shape = 'u8[196608]{0}', space=vmem, size = 0x30000, scoped, tag = 'input window, operand 1, single buffered']
    #allocation6 [shape = 's32[1]{0}', space=sflag, size = 0x4, scoped, tag = 'scoped memory for tpu_custom_call.1']
    #allocation7 [shape = 'u8[2048]{0}', space=vmem, size = 0x800, scoped, tag = 'input window, operand 2, single buffered']
    #allocation8 [shape = 'u8[4096]{0}', space=vmem, size = 0x1000, scoped, tag = 'output window, operand 0, single buffered']
    %8 = vsyncpa [#allocation3], 0
    %9 = vsyncpa [#allocation6], 0
    %10 = vsyncpa [#allocation4], 0
    // Predicated region
    $region2: #{tpu_custom_call.1} parent=1 // pred_check
      _
    $region3: #{tpu_custom_call.1} parent=1 // pred_check_branch
      %12 = sbr.rel (0) target = $region5
    $region4: #{tpu_custom_call.1} parent=1 // pred_region
      %s14 = ssub.s32 128, 128
      %15 = vsyncadd [#allocation3], %s14
      %s17 = sshll.u32 [#allocation2], 4
      %s18 = int_to_ptr.vmem [resolvable:$true] %s17
      %20 = dma.hbm_to_vmem [thread:$0]  %s0, 128, %s18, [#allocation3]
    $region5: #{tpu_custom_call.1} parent=1 // pred_fallthru
      _
    // Predicated region
    $region6: #{tpu_custom_call.1} parent=1 // pred_check
      _
    $region7: #{tpu_custom_call.1} parent=1 // pred_check_branch
      %22 = sbr.rel (0) target = $region9
    $region8: #{tpu_custom_call.1} parent=1 // pred_region
      %s24 = ssub.s32 6144, 6144
      %25 = vsyncadd [#allocation6], %s24
      %s26 = sshll.u32 [#allocation5], 4
      %s27 = int_to_ptr.vmem [resolvable:$true] %s26
      %32 = dma.hbm_to_vmem [thread:$0]  %s1, 6144, %s27, [#allocation6], 128, 128, 8
    $region9: #{tpu_custom_call.1} parent=1 // pred_fallthru
      _
    // Predicated region
    $region10: #{tpu_custom_call.1} parent=1 // pred_check
      _
    $region11: #{tpu_custom_call.1} parent=1 // pred_check_branch
      %34 = sbr.rel (0) target = $region13
    $region12: #{tpu_custom_call.1} parent=1 // pred_region
      %s36 = ssub.s32 64, 64
      %37 = vsyncadd [#allocation6], %s36
      %s39 = sshll.u32 [#allocation7], 4
      %s40 = int_to_ptr.vmem [resolvable:$true] %s39
      %42 = dma.hbm_to_vmem [thread:$0]  %s2, 64, %s40, [#allocation6]
    $region13: #{tpu_custom_call.1} parent=1 // pred_fallthru
      _
    // Predicated region
    $region14: #{tpu_custom_call.1} parent=1 // pred_check
      _
    $region15: #{tpu_custom_call.1} parent=1 // pred_check_branch
      %44 = sbr.rel (0) target = $region17
    $region16: #{tpu_custom_call.1} parent=1 // pred_region
      %45 = dma.done [#allocation3], 128
    $region17: #{tpu_custom_call.1} parent=1 // pred_fallthru
      _
    // Predicated region
    $region18: #{tpu_custom_call.1} parent=1 // pred_check
      _
    $region19: #{tpu_custom_call.1} parent=1 // pred_check_branch
      %47 = sbr.rel (0) target = $region21
    $region20: #{tpu_custom_call.1} parent=1 // pred_region
      %48 = dma.done [#allocation6], 6144
    $region21: #{tpu_custom_call.1} parent=1 // pred_fallthru
      _
    // Predicated region
    $region22: #{tpu_custom_call.1} parent=1 // pred_check
      _
    $region23: #{tpu_custom_call.1} parent=1 // pred_check_branch
      %50 = sbr.rel (0) target = $region25
    $region24: #{tpu_custom_call.1} parent=1 // pred_region
      %51 = dma.done [#allocation6], 64
    $region25: #{tpu_custom_call.1} parent=1 // pred_fallthru
      _
    %v52 = vld [vmem:[#allocation5] sm:$0xff]
    %v53 = vld [vmem:[#allocation5 + $0x8] sm:$0xff]
    %v54 = vld [vmem:[#allocation5 + $0x10] sm:$0xff]
    %v55 = vld [vmem:[#allocation5 + $0x18] sm:$0xff]
    %v56 = vld [vmem:[#allocation5 + $0x20] sm:$0xff]
    %v57 = vld [vmem:[#allocation5 + $0x28] sm:$0xff]
    %v58 = vld [vmem:[#allocation5 + $0x30] sm:$0xff]
    %v59 = vld [vmem:[#allocation5 + $0x38] sm:$0xff]
    %v60 = vld [vmem:[#allocation5 + $0x40] sm:$0xff]
    %v61 = vld [vmem:[#allocation5 + $0x48] sm:$0xff]
    %v62 = vld [vmem:[#allocation5 + $0x50] sm:$0xff]
    %v63 = vld [vmem:[#allocation5 + $0x58] sm:$0xff]
    %v64 = vld [vmem:[#allocation5 + $0x60] sm:$0xff]
    %v65 = vld [vmem:[#allocation5 + $0x68] sm:$0xff]
    %v66 = vld [vmem:[#allocation5 + $0x70] sm:$0xff]
    %v67 = vld [vmem:[#allocation5 + $0x78] sm:$0xff]
    %v68 = vld [vmem:[#allocation5 + $0x80] sm:$0xff]
    %v69 = vld [vmem:[#allocation5 + $0x88] sm:$0xff]
    %v70 = vld [vmem:[#allocation5 + $0x90] sm:$0xff]
    %v71 = vld [vmem:[#allocation5 + $0x98] sm:$0xff]
    %v72 = vld [vmem:[#allocation5 + $0xa0] sm:$0xff]
    %v73 = vld [vmem:[#allocation5 + $0xa8] sm:$0xff]
    %v74 = vld [vmem:[#allocation5 + $0xb0] sm:$0xff]
    %v75 = vld [vmem:[#allocation5 + $0xb8] sm:$0xff]
    %v76 = vld [vmem:[#allocation5 + $0xc0] sm:$0xff]
    %v77 = vld [vmem:[#allocation5 + $0xc8] sm:$0xff]
    %v78 = vld [vmem:[#allocation5 + $0xd0] sm:$0xff]
    %v79 = vld [vmem:[#allocation5 + $0xd8] sm:$0xff]
    %v80 = vld [vmem:[#allocation5 + $0xe0] sm:$0xff]
    %v81 = vld [vmem:[#allocation5 + $0xe8] sm:$0xff]
    %v82 = vld [vmem:[#allocation5 + $0xf0] sm:$0xff]
    %v83 = vld [vmem:[#allocation5 + $0xf8] sm:$0xff]
    %v84 = vld [vmem:[#allocation5 + $0x100] sm:$0xff]
    %v85 = vld [vmem:[#allocation5 + $0x108] sm:$0xff]
    %v86 = vld [vmem:[#allocation5 + $0x110] sm:$0xff]
    %v87 = vld [vmem:[#allocation5 + $0x118] sm:$0xff]
    %v88 = vld [vmem:[#allocation5 + $0x120] sm:$0xff]
    %v89 = vld [vmem:[#allocation5 + $0x128] sm:$0xff]
    %v90 = vld [vmem:[#allocation5 + $0x130] sm:$0xff]
    %v91 = vld [vmem:[#allocation5 + $0x138] sm:$0xff]
    %v92 = vld [vmem:[#allocation5 + $0x140] sm:$0xff]
    %v93 = vld [vmem:[#allocation5 + $0x148] sm:$0xff]
    %v94 = vld [vmem:[#allocation5 + $0x150] sm:$0xff]
    %v95 = vld [vmem:[#allocation5 + $0x158] sm:$0xff]
    %v96 = vld [vmem:[#allocation5 + $0x160] sm:$0xff]
    %v97 = vld [vmem:[#allocation5 + $0x168] sm:$0xff]
    %v98 = vld [vmem:[#allocation5 + $0x170] sm:$0xff]
    %v99 = vld [vmem:[#allocation5 + $0x178] sm:$0xff]
    %v100 = vadd.f32 %v52, %v68
    %v101 = vadd.f32 %v100, %v84
    %v102 = vadd.f32 %v53, %v69
    %v103 = vadd.f32 %v102, %v85
    %v104 = vadd.f32 %v54, %v70
    %v105 = vadd.f32 %v104, %v86
    %v106 = vadd.f32 %v55, %v71
    %v107 = vadd.f32 %v106, %v87
    %v108 = vadd.f32 %v56, %v72
    %v109 = vadd.f32 %v108, %v88
    %v110 = vadd.f32 %v57, %v73
    %v111 = vadd.f32 %v110, %v89
    %v112 = vadd.f32 %v58, %v74
    %v113 = vadd.f32 %v112, %v90
    %v114 = vadd.f32 %v59, %v75
    %v115 = vadd.f32 %v114, %v91
    %v116 = vadd.f32 %v60, %v76
    %v117 = vadd.f32 %v116, %v92
    %v118 = vadd.f32 %v61, %v77
    %v119 = vadd.f32 %v118, %v93
    %v120 = vadd.f32 %v62, %v78
    %v121 = vadd.f32 %v120, %v94
    %v122 = vadd.f32 %v63, %v79
    %v123 = vadd.f32 %v122, %v95
    %v124 = vadd.f32 %v64, %v80
    %v125 = vadd.f32 %v124, %v96
    %v126 = vadd.f32 %v65, %v81
    %v127 = vadd.f32 %v126, %v97
    %v128 = vadd.f32 %v66, %v82
    %v129 = vadd.f32 %v128, %v98
    %v130 = vadd.f32 %v67, %v83
    %v131 = vadd.f32 %v130, %v99
    %v132 = vmul.f32 %v101, 0.33333334
    %v133 = vmul.f32 %v103, 0.33333334
    %v134 = vmul.f32 %v105, 0.33333334
    %v135 = vmul.f32 %v107, 0.33333334
    %v136 = vmul.f32 %v109, 0.33333334
    %v137 = vmul.f32 %v111, 0.33333334
    %v138 = vmul.f32 %v113, 0.33333334
    %v139 = vmul.f32 %v115, 0.33333334
    %v140 = vmul.f32 %v117, 0.33333334
    %v141 = vmul.f32 %v119, 0.33333334
    %v142 = vmul.f32 %v121, 0.33333334
    %v143 = vmul.f32 %v123, 0.33333334
    %v144 = vmul.f32 %v125, 0.33333334
    %v145 = vmul.f32 %v127, 0.33333334
    %v146 = vmul.f32 %v129, 0.33333334
    %v147 = vmul.f32 %v131, 0.33333334
    %v148 = vld [vmem:[#allocation7] sm:$0x7]
    %vm149 = vcmask 1042432
    %v150 = vsel %vm149, %v148, 0.0
    %v151 = vrot.slane %v150, 4
    %v152 = vadd.f32 %v150, %v151
    %v153 = vrot.slane %v152, 2
    %v154 = vadd.f32 %v152, %v153
    %v155 = vrot.slane %v154, 1
    %v156 = vadd.f32 %v154, %v155
    %v157 = vmul.f32 %v156, 0.33333334
    %v158 = vld [vmem:[#allocation2] sm:$0xff]
    %159 = vmatprep.subr.mxu0 0.0
    %160 = vmatpush1.msra.mxu0 %v147
    %161 = vmatprep.subr.mxu0 0.0
    %162 = vmatpush1.msra.mxu0 %v146
    %163 = vmatprep.subr.mxu0 0.0
    %164 = vmatpush1.msra.mxu0 %v145
    %165 = vmatprep.subr.mxu0 0.0
    %166 = vmatpush1.msra.mxu0 %v144
    %167 = vmatprep.subr.mxu0 0.0
    %168 = vmatpush1.msra.mxu0 %v143
    %169 = vmatprep.subr.mxu0 0.0
    %170 = vmatpush1.msra.mxu0 %v142
    %171 = vmatprep.subr.mxu0 0.0
    %172 = vmatpush1.msra.mxu0 %v141
    %173 = vmatprep.subr.mxu0 0.0
    %174 = vmatpush1.msra.mxu0 %v140
    %175 = vmatprep.subr.mxu0 0.0
    %176 = vmatpush1.msra.mxu0 %v139
    %177 = vmatprep.subr.mxu0 0.0
    %178 = vmatpush1.msra.mxu0 %v138
    %179 = vmatprep.subr.mxu0 0.0
    %180 = vmatpush1.msra.mxu0 %v137
    %181 = vmatprep.subr.mxu0 0.0
    %182 = vmatpush1.msra.mxu0 %v136
    %183 = vmatprep.subr.mxu0 0.0
    %184 = vmatpush1.msra.mxu0 %v135
    %185 = vmatprep.subr.mxu0 0.0
    %186 = vmatpush1.msra.mxu0 %v134
    %187 = vmatprep.subr.mxu0 0.0
    %188 = vmatpush1.msra.mxu0 %v133
    %189 = vmatprep.subr.mxu0 0.0
    %190 = vmatpush1.msra.mxu0 %v132
    %191 = vmatprep.subr.mxu0 0.0
    %192 = vmatpush2.msra.mxu0 0.0
    %193 = vmatprep.subr.mxu0 0.0
    %194 = vmatpush2.msra.mxu0 0.0
    %195 = vmatprep.subr.mxu0 0.0
    %196 = vmatpush2.msra.mxu0 0.0
    %197 = vmatprep.subr.mxu0 0.0
    %198 = vmatpush2.msra.mxu0 0.0
    %199 = vmatprep.subr.mxu0 0.0
    %200 = vmatpush2.msra.mxu0 0.0
    %201 = vmatprep.subr.mxu0 0.0
    %202 = vmatpush2.msra.mxu0 0.0
    %203 = vmatprep.subr.mxu0 0.0
    %204 = vmatpush2.msra.mxu0 0.0
    %205 = vmatprep.subr.mxu0 0.0
    %206 = vmatpush2.msra.mxu0 0.0
    %207 = vmatprep.subr.mxu0 0.0
    %208 = vmatpush2.msra.mxu0 0.0
    %209 = vmatprep.subr.mxu0 0.0
    %210 = vmatpush2.msra.mxu0 0.0
    %211 = vmatprep.subr.mxu0 0.0
    %212 = vmatpush2.msra.mxu0 0.0
    %213 = vmatprep.subr.mxu0 0.0
    %214 = vmatpush2.msra.mxu0 0.0
    %215 = vmatprep.subr.mxu0 0.0
    %216 = vmatpush2.msra.mxu0 0.0
    %217 = vmatprep.subr.mxu0 0.0
    %218 = vmatpush2.msra.mxu0 0.0
    %219 = vmatprep.subr.mxu0 0.0
    %220 = vmatpush2.msra.mxu0 0.0
    %221 = vmatprep.subr.mxu0 0.0
    %222 = vmatpush2.msra.mxu0 0.0
    %223 = vmatprep.mubr.f32.mxu0 0.0
    %224 = vmatmul.mubr.f32.gmra.mxu0 %v158
    %v225 = vpop.f32.mrf.mxu0
    %v226 = vadd.f32 %v157, %v225
    %v227 = vpop.f32.mrf.mxu0
    %228 = vdwg.mxu0
    %229 = vst [vmem:[#allocation8] sm:$0xff] %v226
    // Predicated region
    $region26: #{tpu_custom_call.1} parent=1 // pred_check
      _
    $region27: #{tpu_custom_call.1} parent=1 // pred_check_branch
      %231 = sbr.rel (0) target = $region29
    $region28: #{tpu_custom_call.1} parent=1 // pred_region
      %s233 = ssub.s32 128, 128
      %234 = vsyncadd [#allocation4], %s233
      %s236 = sshll.u32 [#allocation8], 4
      %s237 = int_to_ptr.vmem [resolvable:$true] %s236
      %239 = dma.vmem_to_hbm [thread:$0]  %s237, 128, %s3, [#allocation4]
    $region29: #{tpu_custom_call.1} parent=1 // pred_fallthru
      _
    // Predicated region
    $region30: #{tpu_custom_call.1} parent=1 // pred_check
      _
    $region31: #{tpu_custom_call.1} parent=1 // pred_check_branch
      %241 = sbr.rel (0) target = $region33
    $region32: #{tpu_custom_call.1} parent=1 // pred_region
      %242 = dma.done [#allocation4], 128
    $region33: #{tpu_custom_call.1} parent=1 // pred_fallthru
      _
    %243 = vsyncpa [#allocation3], 1
    %244 = vsyncpa [#allocation6], 1
    %245 = vsyncpa [#allocation4], 1

</llo_original>
